<compile_context>
chip_gen: v7x
topology: tpu7x:2x2x1
jax: 0.10.0
libtpu: 0.0.40
codegen_flags: <defaults>
</compile_context>

<pallas_src>
import functools
import math

import jax
import jax.numpy as jnp
from jax.experimental import pallas as pl
from jax.experimental.pallas import tpu as pltpu

LANE = 128
SUBLANE = 8


def _cdiv(a: int, b: int) -> int:
    return -(-a // b)


def _round_up(n: int, m: int) -> int:
    return _cdiv(n, m) * m


# ---------------------------------------------------------------------------
# Kernel: fused Linear -> ReLU -> Linear over one batch tile.
# Weights / biases are VMEM-resident across all grid steps (constant index_map,
# single-buffered).  x arrives in its original dtype and is cast to bf16 on the
# VPU right before the first dot; accumulation is f32; the output is stored
# directly in the caller's dtype with a lane-dense (128-wide) last dim.
# ---------------------------------------------------------------------------
def mlp_kernel(x_ref, w1_ref, b1_ref, w2_ref, b2_ref, o_ref):
    # x: (tb, d_in) x.dtype | w1: (d_in, hid_p) bf16 | b1: (1, hid_p) f32
    # w2: (hid_p, d_out_p) bf16 | b2: (1, d_out_p) f32 | o: (tb, d_out_p) x.dtype
    x = x_ref[...].astype(w1_ref.dtype)                      # in-kernel cast
    h = jnp.dot(x, w1_ref[...], preferred_element_type=jnp.float32)
    h = jnp.maximum(h + b1_ref[...], 0.0)                    # bias + ReLU in f32
    out = jnp.dot(h.astype(w2_ref.dtype), w2_ref[...],
                  preferred_element_type=jnp.float32)
    o_ref[...] = (out + b2_ref[...]).astype(o_ref.dtype)


def prepare_params(params, *, use_bf16=True):
    """Pad/cast weights ONCE (init / param-load time), not per forward call.

    hidden and d_out are zero-padded to multiples of 128 so the intermediate h
    and the output stores are lane-dense; d_in is left untouched (the kernel
    keeps it as a full-extent block dim, so no padding is needed there).
    """
    w1, b1, w2, b2 = params            # (d_in,h), (1,h), (h,d_out), (1,d_out)
    d_in, hidden = w1.shape
    d_out = w2.shape[1]
    hid_p = _round_up(hidden, LANE)
    d_out_p = _round_up(d_out, LANE)
    wdt = jnp.bfloat16 if use_bf16 else jnp.float32
    w1_p = jnp.zeros((d_in, hid_p), wdt).at[:, :hidden].set(w1.astype(wdt))
    b1_p = jnp.zeros((1, hid_p), jnp.float32).at[:, :hidden].set(
        b1.astype(jnp.float32))
    w2_p = jnp.zeros((hid_p, d_out_p), wdt).at[:hidden, :d_out].set(
        w2.astype(wdt))
    b2_p = jnp.zeros((1, d_out_p), jnp.float32).at[:, :d_out].set(
        b2.astype(jnp.float32))
    return w1_p, b1_p, w2_p, b2_p


def _vmem_limit_bytes():
    # Per-generation VMEM budget: ~5/6 of physical VMEM (headroom for compiler
    # scratch / semaphores).  v5e/v6e 128 MiB -> ~107 MiB, v7x 64 MiB -> ~53 MiB.
    try:
        cap = pltpu.get_tpu_info().vmem_capacity_bytes
    except Exception:
        cap = 64 * 1024 * 1024          # conservative fallback, valid everywhere
    return int(cap - cap // 6)


def _choose_batch_tile(B, block_batch):
    # Spread B as evenly as possible over the tiles (avoids padding a nearly
    # full extra tile on unlucky batch sizes) and use >= 2 tiles whenever the
    # batch allows it so both v7x TensorCores get work.  tb is a multiple of 8
    # (sublane) unless it is the full batch (full-extent block dims are always
    # layout-legal).
    n_tiles = max(_cdiv(B, block_batch), 2 if B >= 2 * SUBLANE else 1)
    tb = _round_up(_cdiv(B, n_tiles), SUBLANE)
    if tb >= B:
        tb = B
    return tb


def network_forward(x, prepared_params, *, d_out, block_batch=1024):
    """Equivalent of Network(net)(x) for net = Linear -> ReLU -> Linear."""
    w1_p, b1_p, w2_p, b2_p = prepared_params
    B, d_in = x.shape
    hid_p = w1_p.shape[1]
    d_out_p = w2_p.shape[1]
    assert w1_p.shape[0] == d_in

    tb = _choose_batch_tile(B, block_batch)
    n_tiles = _cdiv(B, tb)

    wbytes = jnp.dtype(w1_p.dtype).itemsize
    xbytes = jnp.dtype(x.dtype).itemsize
    flops = 2 * B * (d_in * hid_p + hid_p * d_out_p)
    bytes_accessed = (B * d_in * xbytes                     # x in (unpadded)
                      + (d_in * hid_p + hid_p * d_out_p) * wbytes
                      + (hid_p + d_out_p) * 4               # biases
                      + B * d_out_p * xbytes)               # out

    # Grid-invariant operands: resident in VMEM, single-buffered (they never
    # change across grid steps, so double-buffering would just waste VMEM).
    def const_spec(shape):
        return pl.BlockSpec(shape, lambda i: (0, 0),
                            pipeline_mode=pl.Buffered(1))

    out_p = pl.pallas_call(
        mlp_kernel,
        out_shape=jax.ShapeDtypeStruct((B, d_out_p), x.dtype),
        grid_spec=pltpu.PrefetchScalarGridSpec(
            num_scalar_prefetch=0,
            grid=(n_tiles,),
            in_specs=[
                pl.BlockSpec((tb, d_in), lambda i: (i, 0)),   # x tile, unpadded
                const_spec((d_in, hid_p)),                    # w1 resident
                const_spec((1, hid_p)),                       # b1 resident
                const_spec((hid_p, d_out_p)),                 # w2 resident
                const_spec((1, d_out_p)),                     # b2 resident
            ],
            out_specs=pl.BlockSpec((tb, d_out_p), lambda i: (i, 0)),
        ),
        compiler_params=pltpu.CompilerParams(
            dimension_semantics=("parallel",),   # batch tiles shard across TCs
            vmem_limit_bytes=_vmem_limit_bytes(),
        ),
        cost_estimate=pl.CostEstimate(
            flops=int(flops), transcendentals=0,
            bytes_accessed=int(bytes_accessed)),
    )(x, w1_p, b1_p, w2_p, b2_p)

    # TODO(synk): if resident (padded, bf16) w1+w2 ever exceed ~20 MiB (v7x
    # budget), add a hidden/K grid axis ("arbitrary", last) with an f32 VMEM
    # accumulator instead of keeping both layers fully resident.
    return out_p[:, :d_out]            # slice off feature padding only


def init_params(key, d_in, hidden, d_out, dtype=jnp.float32):
    """PyTorch nn.Linear-style init (U(-1/sqrt(fan_in), +1/sqrt(fan_in))).

    Weights are stored transposed relative to PyTorch ((in, out) vs (out, in)).
    """
    k1, k2, k3, k4 = jax.random.split(key, 4)
    bound1 = 1.0 / math.sqrt(d_in)
    bound2 = 1.0 / math.sqrt(hidden)
    w1 = jax.random.uniform(k1, (d_in, hidden), dtype, -bound1, bound1)
    b1 = jax.random.uniform(k2, (1, hidden), dtype, -bound1, bound1)
    w2 = jax.random.uniform(k3, (hidden, d_out), dtype, -bound2, bound2)
    b2 = jax.random.uniform(k4, (1, d_out), dtype, -bound2, bound2)
    return w1, b1, w2, b2


def reference_forward(x, params, use_bf16=True):
    """Pure-JAX reference mirroring the kernel's mixed precision."""
    w1, b1, w2, b2 = params
    cdtype = jnp.bfloat16 if use_bf16 else x.dtype
    xf = x.astype(cdtype).astype(jnp.float32)
    w1f = w1.astype(cdtype).astype(jnp.float32)
    w2f = w2.astype(cdtype).astype(jnp.float32)
    h = jnp.maximum(xf @ w1f + b1.astype(jnp.float32), 0.0)
    hf = h.astype(cdtype).astype(jnp.float32)
    out = hf @ w2f + b2.astype(jnp.float32)
    return out.astype(x.dtype)


if __name__ == "__main__":
    # Small shapes consistent with the representative net (toy case; the
    # kernel scales to large batches where it is HBM-bound on x).
    B, D_IN, HIDDEN, D_OUT = 8, 32, 32, 4

    key = jax.random.PRNGKey(0)
    k_x, k_p = jax.random.split(key)
    x = jax.random.normal(k_x, (B, D_IN), dtype=jnp.float32)
    params = init_params(k_p, D_IN, HIDDEN, D_OUT)

    # One-time weight preparation (pad to lane width + cast to bf16).
    prepared = prepare_params(params)

    fwd = jax.jit(network_forward, static_argnames=("d_out", "block_batch"))
    out = jax.block_until_ready(fwd(x, prepared, d_out=D_OUT))

    ref = reference_forward(x, params)
    assert out.shape == (B, D_OUT)
    assert out.dtype == x.dtype
    assert jnp.allclose(out, ref, atol=1e-3, rtol=1e-3), (
        float(jnp.max(jnp.abs(out - ref))))

    print("KERNEL_OK")
</pallas_src>

<mosaic_0001>
module attributes {stable_mosaic.version = 11 : i64} {
  func.func @mlp_kernel(%arg0: i32, %arg1: memref<8x32xf32, #tpu.memory_space<vmem>>, %arg2: memref<32x128xbf16, #tpu.memory_space<vmem>>, %arg3: memref<1x128xf32, #tpu.memory_space<vmem>>, %arg4: memref<128x128xbf16, #tpu.memory_space<vmem>>, %arg5: memref<1x128xf32, #tpu.memory_space<vmem>>, %arg6: memref<8x128xf32, #tpu.memory_space<vmem>>) attributes {dimension_semantics = [#tpu.dimension_semantics<parallel>], iteration_bounds = array<i64: 1>, scalar_prefetch = 0 : i64, scratch_operands = 0 : i64, tpu.core_type = #tpu.core_type<tc>, window_params = [{transform_indices = @transform_0, window_bounds = array<i64: 8, 32>}, {pipeline_mode = #tpu.pipeline_mode<synchronous>, transform_indices = @transform_1, window_bounds = array<i64: 32, 128>}, {pipeline_mode = #tpu.pipeline_mode<synchronous>, transform_indices = @transform_2, window_bounds = array<i64: 1, 128>}, {pipeline_mode = #tpu.pipeline_mode<synchronous>, transform_indices = @transform_3, window_bounds = array<i64: 128, 128>}, {pipeline_mode = #tpu.pipeline_mode<synchronous>, transform_indices = @transform_4, window_bounds = array<i64: 1, 128>}, {transform_indices = @transform_5, window_bounds = array<i64: 8, 128>}]} {
    %c0 = arith.constant 0 : index
    %c0_0 = arith.constant 0 : index
    %0 = vector.load %arg1[%c0, %c0_0] : memref<8x32xf32, #tpu.memory_space<vmem>>, vector<8x32xf32>
    %1 = arith.truncf %0 : vector<8x32xf32> to vector<8x32xbf16>
    %c0_1 = arith.constant 0 : index
    %c0_2 = arith.constant 0 : index
    %2 = vector.load %arg2[%c0_1, %c0_2] : memref<32x128xbf16, #tpu.memory_space<vmem>>, vector<32x128xbf16>
    %cst = arith.constant dense<0.000000e+00> : vector<8x128xf32>
    %3 = tpu.matmul %1, %2, %cst {dimension_numbers = #tpu.dot_dimension_numbers<[1], [0], [0], [1], [0, 0, 1, 1], [], []>} : vector<8x32xbf16>, vector<32x128xbf16>, vector<8x128xf32> -> vector<8x128xf32>
    %c0_3 = arith.constant 0 : index
    %c0_4 = arith.constant 0 : index
    %4 = vector.load %arg3[%c0_3, %c0_4] : memref<1x128xf32, #tpu.memory_space<vmem>>, vector<1x128xf32>
    %5 = vector.broadcast %4 : vector<1x128xf32> to vector<8x128xf32>
    %6 = arith.addf %3, %5 : vector<8x128xf32>
    %cst_5 = arith.constant 0.000000e+00 : f32
    %7 = vector.broadcast %cst_5 : f32 to vector<8x128xf32>
    %8 = arith.maximumf %6, %7 : vector<8x128xf32>
    %9 = arith.truncf %8 : vector<8x128xf32> to vector<8x128xbf16>
    %c0_6 = arith.constant 0 : index
    %c0_7 = arith.constant 0 : index
    %10 = vector.load %arg4[%c0_6, %c0_7] : memref<128x128xbf16, #tpu.memory_space<vmem>>, vector<128x128xbf16>
    %cst_8 = arith.constant dense<0.000000e+00> : vector<8x128xf32>
    %11 = tpu.matmul %9, %10, %cst_8 {dimension_numbers = #tpu.dot_dimension_numbers<[1], [0], [0], [1], [0, 0, 1, 1], [], []>} : vector<8x128xbf16>, vector<128x128xbf16>, vector<8x128xf32> -> vector<8x128xf32>
    %c0_9 = arith.constant 0 : index
    %c0_10 = arith.constant 0 : index
    %12 = vector.load %arg5[%c0_9, %c0_10] : memref<1x128xf32, #tpu.memory_space<vmem>>, vector<1x128xf32>
    %13 = vector.broadcast %12 : vector<1x128xf32> to vector<8x128xf32>
    %14 = arith.addf %11, %13 : vector<8x128xf32>
    %c0_11 = arith.constant 0 : index
    %c0_12 = arith.constant 0 : index
    %15 = vector.load %arg6[%c0_11, %c0_12] : memref<8x128xf32, #tpu.memory_space<vmem>>, vector<8x128xf32>
    tpu.vector_store %arg6[%c0_11, %c0_12], %14 {strides = array<i32>} : memref<8x128xf32, #tpu.memory_space<vmem>>, vector<8x128xf32>,
    return
  }
  func.func @transform_0(%arg0: i32) -> (i32, i32) {
    %c0_i32 = arith.constant 0 : i32
    %c0_i32_0 = arith.constant 0 : i32
    return %arg0, %c0_i32 : i32, i32
  }
  func.func @transform_1(%arg0: i32) -> (i32, i32) {
    %c0_i32 = arith.constant 0 : i32
    %c0_i32_0 = arith.constant 0 : i32
    %c0_i32_1 = arith.constant 0 : i32
    return %c0_i32, %c0_i32_0 : i32, i32
  }
  func.func @transform_2(%arg0: i32) -> (i32, i32) {
    %c0_i32 = arith.constant 0 : i32
    %c0_i32_0 = arith.constant 0 : i32
    %c0_i32_1 = arith.constant 0 : i32
    return %c0_i32, %c0_i32_0 : i32, i32
  }
  func.func @transform_3(%arg0: i32) -> (i32, i32) {
    %c0_i32 = arith.constant 0 : i32
    %c0_i32_0 = arith.constant 0 : i32
    %c0_i32_1 = arith.constant 0 : i32
    return %c0_i32, %c0_i32_0 : i32, i32
  }
  func.func @transform_4(%arg0: i32) -> (i32, i32) {
    %c0_i32 = arith.constant 0 : i32
    %c0_i32_0 = arith.constant 0 : i32
    %c0_i32_1 = arith.constant 0 : i32
    return %c0_i32, %c0_i32_0 : i32, i32
  }
  func.func @transform_5(%arg0: i32) -> (i32, i32) {
    %c0_i32 = arith.constant 0 : i32
    %c0_i32_0 = arith.constant 0 : i32
    return %arg0, %c0_i32 : i32, i32
  }
}

</mosaic_0001>

<llo_original>
// kernel: network_forward.1
$region0: #{network_forward.1}
  #allocation0 [shape = 'u32[]', space=smem, size = 0x4, offset = 0x4, fixed_abs, tag = 'smem constant byte address 0x4 - core index']
  #allocation1 [shape = 'u32[144,128]{1,0:T(1,128)}', space=vmem, size = 0x12000, scoped, tag = 'internal scratch']
  %s0 = inlined_call_operand.hbm [shape: f32[8,32], index: 0, kind: input, shape index: {}]
  %s1 = inlined_call_operand.hbm [shape: bf16[32,128], index: 1, kind: input, shape index: {}]
  %s2 = inlined_call_operand.vmem [shape: f32[1,128], index: 2, kind: input, shape index: {}]
  %s3 = inlined_call_operand.hbm [shape: bf16[128,128], index: 3, kind: input, shape index: {}]
  %s4 = inlined_call_operand.vmem [shape: f32[1,128], index: 4, kind: input, shape index: {}]
  %s5 = inlined_call_operand.vmem [shape: f32[8,128], index: 5, kind: output, shape index: {}]
  %s6 = sld [smem:[#allocation0]]
  $region42: #{network_forward.1} parent=0
    _
  %s8 = ssub.s32 1, %s6
  %s9 = scalar_select 0, %s8, %s6
  $region1: #{network_forward.1} parent=0
    #allocation2 [shape = 'u8[4096]{0}', space=vmem, size = 0x1000, scoped, tag = 'input window, operand 0, single buffered']
    #allocation3 [shape = 's32[1]{0}', space=sflag, size = 0x4, scoped, tag = 'scoped memory for network_forward.1']
    #allocation4 [shape = 'u8[8192]{0}', space=vmem, size = 0x2000, scoped, tag = 'input window, operand 1, single buffered']
    #allocation5 [shape = 's32[1]{0}', space=sflag, size = 0x4, scoped, tag = 'scoped memory for network_forward.1']
    #allocation6 [shape = 'u8[32768]{0}', space=vmem, size = 0x8000, scoped, tag = 'input window, operand 3, single buffered']
    %10 = vsyncpa [#allocation3], 0
    %11 = vsyncpa [#allocation5], 0
    // Predicated region
    $region2: #{network_forward.1} parent=1 // pred_check
      _
    $region3: #{network_forward.1} parent=1 // pred_check_branch
      %13 = sbr.rel (0) target = $region5
    $region4: #{network_forward.1} parent=1 // pred_region
      %s15 = ssub.s32 128, 128
      %16 = vsyncadd [#allocation3], %s15
      %s18 = sshll.u32 [#allocation2], 4
      %s19 = int_to_ptr.vmem [resolvable:$true] %s18
      %21 = dma.hbm_to_vmem [thread:$0]  %s0, 128, %s19, [#allocation3]
    $region5: #{network_forward.1} parent=1 // pred_fallthru
      _
    // Predicated region
    $region6: #{network_forward.1} parent=1 // pred_check
      _
    $region7: #{network_forward.1} parent=1 // pred_check_branch
      %23 = sbr.rel (0) target = $region9
    $region8: #{network_forward.1} parent=1 // pred_region
      %s25 = ssub.s32 256, 256
      %26 = vsyncadd [#allocation5], %s25
      %s27 = sshll.u32 [#allocation4], 4
      %s28 = int_to_ptr.vmem [resolvable:$true] %s27
      %33 = dma.hbm_to_vmem [thread:$0]  %s1, 256, %s28, [#allocation5], 64, 64, 4
    $region9: #{network_forward.1} parent=1 // pred_fallthru
      _
    // Predicated region
    $region10: #{network_forward.1} parent=1 // pred_check
      _
    $region11: #{network_forward.1} parent=1 // pred_check_branch
      %35 = sbr.rel (0) target = $region13
    $region12: #{network_forward.1} parent=1 // pred_region
      _
    $region13: #{network_forward.1} parent=1 // pred_fallthru
      _
    // Predicated region
    $region14: #{network_forward.1} parent=1 // pred_check
      _
    $region15: #{network_forward.1} parent=1 // pred_check_branch
      %37 = sbr.rel (0) target = $region17
    $region16: #{network_forward.1} parent=1 // pred_region
      %s39 = ssub.s32 1024, 1024
      %40 = vsyncadd [#allocation5], %s39
      %s41 = sshll.u32 [#allocation6], 4
      %s42 = int_to_ptr.vmem [resolvable:$true] %s41
      %47 = dma.hbm_to_vmem [thread:$0]  %s3, 1024, %s42, [#allocation5], 64, 64, 4
    $region17: #{network_forward.1} parent=1 // pred_fallthru
      _
    // Predicated region
    $region18: #{network_forward.1} parent=1 // pred_check
      _
    $region19: #{network_forward.1} parent=1 // pred_check_branch
      %49 = sbr.rel (0) target = $region21
    $region20: #{network_forward.1} parent=1 // pred_region
      _
    $region21: #{network_forward.1} parent=1 // pred_fallthru
      _
    // Predicated region
    $region22: #{network_forward.1} parent=1 // pred_check
      _
    $region23: #{network_forward.1} parent=1 // pred_check_branch
      %51 = sbr.rel (0) target = $region25
    $region24: #{network_forward.1} parent=1 // pred_region
      %52 = dma.done [#allocation3], 128
    $region25: #{network_forward.1} parent=1 // pred_fallthru
      _
    // Predicated region
    $region26: #{network_forward.1} parent=1 // pred_check
      _
    $region27: #{network_forward.1} parent=1 // pred_check_branch
      %54 = sbr.rel (0) target = $region29
    $region28: #{network_forward.1} parent=1 // pred_region
      %55 = dma.done [#allocation5], 256
    $region29: #{network_forward.1} parent=1 // pred_fallthru
      _
    // Predicated region
    $region30: #{network_forward.1} parent=1 // pred_check
      _
    $region31: #{network_forward.1} parent=1 // pred_check_branch
      %57 = sbr.rel (0) target = $region33
    $region32: #{network_forward.1} parent=1 // pred_region
      %58 = dma.done [#allocation5], 1024
    $region33: #{network_forward.1} parent=1 // pred_fallthru
      _
    %v60 = vld [vmem:[#allocation2] sm:$0xff]
    %v61 = vpack.c.bf16 %v60, %v60
    %v62 = vld [vmem:[#allocation4] sm:$0xf]
    %v63 = vld [vmem:[#allocation4 + $0x4] sm:$0xf]
    %v64 = vld [vmem:[#allocation4 + $0x8] sm:$0xf]
    %v65 = vld [vmem:[#allocation4 + $0xc] sm:$0xf]
    %v66 = vld [vmem:[%s2] sm:$0x1]
    %v68 = vlaneseq
    %v69 = vshrl.u32 %v68, 7
    %v70 = vsub.s32 0, %v69
    %v71 = vrot.slane %v66, %v70
    %v77 = vunpack.c.l.b16 %v62
    %v78 = vunpack.c.l.b16 %v63
    %v79 = vunpack.c.l.b16 %v64
    %v80 = vunpack.c.l.b16 %v65
    %v81 = vpack.c.b16 %v78, %v77
    %v82 = vpack.c.b16 %v80, %v79
    %vm85 = vcmask 261120
    %v87 = vsel %vm85, %v61, 0
    %89 = vmatprep.subr.bf16.mxu0 0
    %90 = vmatpush1.bf16.msra.mxu0 %v81
    %91 = vmatprep.subr.bf16.mxu0 0
    %92 = vmatpush1.bf16.msra.mxu0 %v82
    %93 = vmatprep.subr.bf16.mxu0 0
    %94 = vmatpush1.bf16.msra.mxu0 0
    %95 = vmatprep.subr.bf16.mxu0 0
    %96 = vmatpush1.bf16.msra.mxu0 0
    %97 = vmatprep.subr.bf16.mxu0 0
    %98 = vmatpush1.bf16.msra.mxu0 0
    %99 = vmatprep.subr.bf16.mxu0 0
    %100 = vmatpush1.bf16.msra.mxu0 0
    %101 = vmatprep.subr.bf16.mxu0 0
    %102 = vmatpush1.bf16.msra.mxu0 0
    %103 = vmatprep.subr.bf16.mxu0 0
    %104 = vmatpush1.bf16.msra.mxu0 0
    %105 = vmatprep.subr.bf16.mxu0 0
    %106 = vmatpush1.bf16.msra.mxu0 0
    %107 = vmatprep.subr.bf16.mxu0 0
    %108 = vmatpush1.bf16.msra.mxu0 0
    %109 = vmatprep.subr.bf16.mxu0 0
    %110 = vmatpush1.bf16.msra.mxu0 0
    %111 = vmatprep.subr.bf16.mxu0 0
    %112 = vmatpush1.bf16.msra.mxu0 0
    %113 = vmatprep.subr.bf16.mxu0 0
    %114 = vmatpush1.bf16.msra.mxu0 0
    %115 = vmatprep.subr.bf16.mxu0 0
    %116 = vmatpush1.bf16.msra.mxu0 0
    %117 = vmatprep.subr.bf16.mxu0 0
    %118 = vmatpush1.bf16.msra.mxu0 0
    %119 = vmatprep.subr.bf16.mxu0 0
    %120 = vmatpush1.bf16.msra.mxu0 0
    %121 = vmatprep.mubr.bf16.mxu0 0
    %122 = vmatmul.mubr.bf16.gmra.mrb[0].mxu0 %v87
    %v123 = vpop.f32.mrb[0].mxu0
    %v124 = vadd.f32 %v71, %v123
    %v125 = vpop.f32.mrb[0].mxu0
    %v126 = vpop.f32.mrb[0].mxu0
    %v127 = vpop.f32.mrb[0].mxu0
    %128 = vdwg.mxu0
    %v129 = vmax.f32 %v124, 0.0
    %v130 = vpack.c.bf16 %v129, %v129
    %v131 = vld [vmem:[#allocation6] sm:$0xf]
    %v132 = vld [vmem:[#allocation6 + $0x4] sm:$0xf]
    %v133 = vld [vmem:[#allocation6 + $0x8] sm:$0xf]
    %v134 = vld [vmem:[#allocation6 + $0xc] sm:$0xf]
    %v135 = vld [vmem:[#allocation6 + $0x10] sm:$0xf]
    %v136 = vld [vmem:[#allocation6 + $0x14] sm:$0xf]
    %v137 = vld [vmem:[#allocation6 + $0x18] sm:$0xf]
    %v138 = vld [vmem:[#allocation6 + $0x1c] sm:$0xf]
    %v139 = vld [vmem:[#allocation6 + $0x20] sm:$0xf]
    %v140 = vld [vmem:[#allocation6 + $0x24] sm:$0xf]
    %v141 = vld [vmem:[#allocation6 + $0x28] sm:$0xf]
    %v142 = vld [vmem:[#allocation6 + $0x2c] sm:$0xf]
    %v143 = vld [vmem:[#allocation6 + $0x30] sm:$0xf]
    %v144 = vld [vmem:[#allocation6 + $0x34] sm:$0xf]
    %v145 = vld [vmem:[#allocation6 + $0x38] sm:$0xf]
    %v146 = vld [vmem:[#allocation6 + $0x3c] sm:$0xf]
    %v147 = vld [vmem:[%s4] sm:$0x1]
    %v149 = vlaneseq
    %v150 = vshrl.u32 %v149, 7
    %v151 = vsub.s32 0, %v150
    %v152 = vrot.slane %v147, %v151
    %v170 = vunpack.c.l.b16 %v131
    %v171 = vunpack.c.l.b16 %v132
    %v172 = vunpack.c.l.b16 %v133
    %v173 = vunpack.c.l.b16 %v134
    %v174 = vunpack.c.l.b16 %v135
    %v175 = vunpack.c.l.b16 %v136
    %v176 = vunpack.c.l.b16 %v137
    %v177 = vunpack.c.l.b16 %v138
    %v178 = vunpack.c.l.b16 %v139
    %v179 = vunpack.c.l.b16 %v140
    %v180 = vunpack.c.l.b16 %v141
    %v181 = vunpack.c.l.b16 %v142
    %v182 = vunpack.c.l.b16 %v143
    %v183 = vunpack.c.l.b16 %v144
    %v184 = vunpack.c.l.b16 %v145
    %v185 = vunpack.c.l.b16 %v146
    %v186 = vpack.c.b16 %v171, %v170
    %v187 = vpack.c.b16 %v173, %v172
    %v188 = vpack.c.b16 %v175, %v174
    %v189 = vpack.c.b16 %v177, %v176
    %v190 = vpack.c.b16 %v179, %v178
    %v191 = vpack.c.b16 %v181, %v180
    %v192 = vpack.c.b16 %v183, %v182
    %v193 = vpack.c.b16 %v185, %v184
    %202 = vmatprep.subr.bf16.mxu0 0
    %203 = vmatpush1.bf16.msra.mxu0 %v186
    %204 = vmatprep.subr.bf16.mxu0 0
    %205 = vmatpush1.bf16.msra.mxu0 %v187
    %206 = vmatprep.subr.bf16.mxu0 0
    %207 = vmatpush1.bf16.msra.mxu0 %v188
    %208 = vmatprep.subr.bf16.mxu0 0
    %209 = vmatpush1.bf16.msra.mxu0 %v189
    %210 = vmatprep.subr.bf16.mxu0 0
    %211 = vmatpush1.bf16.msra.mxu0 %v190
    %212 = vmatprep.subr.bf16.mxu0 0
    %213 = vmatpush1.bf16.msra.mxu0 %v191
    %214 = vmatprep.subr.bf16.mxu0 0
    %215 = vmatpush1.bf16.msra.mxu0 %v192
    %216 = vmatprep.subr.bf16.mxu0 0
    %217 = vmatpush1.bf16.msra.mxu0 %v193
    %218 = vmatprep.subr.bf16.mxu0 0
    %219 = vmatpush1.bf16.msra.mxu0 0
    %220 = vmatprep.subr.bf16.mxu0 0
    %221 = vmatpush1.bf16.msra.mxu0 0
    %222 = vmatprep.subr.bf16.mxu0 0
    %223 = vmatpush1.bf16.msra.mxu0 0
    %224 = vmatprep.subr.bf16.mxu0 0
    %225 = vmatpush1.bf16.msra.mxu0 0
    %226 = vmatprep.subr.bf16.mxu0 0
    %227 = vmatpush1.bf16.msra.mxu0 0
    %228 = vmatprep.subr.bf16.mxu0 0
    %229 = vmatpush1.bf16.msra.mxu0 0
    %230 = vmatprep.subr.bf16.mxu0 0
    %231 = vmatpush1.bf16.msra.mxu0 0
    %232 = vmatprep.subr.bf16.mxu0 0
    %233 = vmatpush1.bf16.msra.mxu0 0
    %234 = vmatprep.mubr.bf16.mxu0 0
    %235 = vmatmul.mubr.bf16.gmra.mrb[0].mxu0 %v130
    %v236 = vpop.f32.mrb[0].mxu0
    %v237 = vadd.f32 %v152, %v236
    %v238 = vpop.f32.mrb[0].mxu0
    %v239 = vpop.f32.mrb[0].mxu0
    %v240 = vpop.f32.mrb[0].mxu0
    %241 = vdwg.mxu0
    %242 = vst [vmem:[%s5] sm:$0xff] %v237
    // Predicated region
    $region34: #{network_forward.1} parent=1 // pred_check
      _
    $region35: #{network_forward.1} parent=1 // pred_check_branch
      %244 = sbr.rel (0) target = $region37
    $region36: #{network_forward.1} parent=1 // pred_region
      _
    $region37: #{network_forward.1} parent=1 // pred_fallthru
      _
    // Predicated region
    $region38: #{network_forward.1} parent=1 // pred_check
      _
    $region39: #{network_forward.1} parent=1 // pred_check_branch
      %246 = sbr.rel (0) target = $region41
    $region40: #{network_forward.1} parent=1 // pred_region
      _
    $region41: #{network_forward.1} parent=1 // pred_fallthru
      _
    %247 = vsyncpa [#allocation3], 1
    %248 = vsyncpa [#allocation5], 1

</llo_original>
